<compile_context>
chip_gen: v7x
topology: tpu7x:2x2x1
jax: 0.10.0
libtpu: 0.0.40
codegen_flags: <defaults>
</compile_context>

<pallas_src>
import jax
import jax.numpy as jnp
from jax.experimental import pallas as pl
from jax.experimental.pallas import tpu as pltpu

_HP = 128  # hidden dim (100) zero-padded to one full lane width


def _round_up(n, m):
    return ((n + m - 1) // m) * m


# --------------------------------------------------------------------------- #
# Kernel
# --------------------------------------------------------------------------- #
def domain_classifier_kernel(x_ref, w1_ref, b1_ref, w2_ref, b2_ref, o_ref):
    # fc1 on the MXU: (TB, F) @ (F, 128), f32 accumulate.
    # (Default matmul precision matches the pure-JAX reference; pass
    #  precision=lax.Precision.HIGHEST here if bit-faithful f32 parity with the
    #  PyTorch module is required.)
    h = jnp.dot(x_ref[...], w1_ref[...], preferred_element_type=jnp.float32)
    # bias + ReLU on the VPU (padded hidden columns stay exactly 0).
    h = jnp.maximum(h + b1_ref[...], 0.0)
    # fc2 (N=1): VPU multiply + XLU lane reduction.  keepdims keeps the result
    # in its natural (TB, 1) layout -> no sublane->lane relayout before store.
    z = jnp.sum(h * w2_ref[...], axis=-1, keepdims=True) + b2_ref[0, 0]
    o_ref[...] = jax.nn.sigmoid(z).astype(o_ref.dtype)          # EUP exp/recip


# --------------------------------------------------------------------------- #
# Tiling / budget helpers (generation aware)
# --------------------------------------------------------------------------- #
def _tpu_vmem_capacity_bytes():
    try:
        cap = getattr(pltpu.get_tpu_info(), "vmem_capacity_bytes", None)
        if cap:
            return int(cap)
    except Exception:
        pass
    return 64 * 1024 * 1024   # conservative fallback (v7x-sized VMEM)


def _tiling_config():
    """Returns (budget_bytes, max_tile, vmem_limit_bytes, split_for_two_cores)."""
    vmem = _tpu_vmem_capacity_bytes()
    if vmem >= 128 * 1024 * 1024:                 # v5e / v6e: 128 MiB VMEM, 1 TC
        return 88 * 1024 * 1024, 8192, 112 * 1024 * 1024, False
    # v7x-class: 64 MiB VMEM per TensorCore, 2 TCs share the "parallel" grid.
    return 40 * 1024 * 1024, 4096, 56 * 1024 * 1024, True


def _pick_batch_tile(B, F, x_itemsize, *, budget_bytes, max_tile):
    """Largest batch tile (multiple of 128) whose pipelined buffers fit the budget."""
    Fp = _round_up(F, 128)                        # lane-padded x row width
    per_row = (2 * Fp * x_itemsize                # double-buffered x tile rows
               + 2 * _HP * 4                      # f32 hidden activation + temp
               + 2 * 128 * 4)                     # double-buffered (TB,1) out tile pad
    fixed = 2 * (Fp * _HP * x_itemsize            # double-buffered resident w1
                 + 2 * 8 * _HP * 4)               # double-buffered b1 + w2 tiles
    avail = budget_bytes - fixed
    if avail < per_row * 128:
        # Resident weights nearly fill the budget; fall back to the minimum tile.
        # TODO(synk): K-tile over F (second "arbitrary" grid axis + f32 VMEM
        # accumulator) for very large in_features instead of this fallback.
        return 128
    tb = (avail // per_row) // 128 * 128
    return max(128, min(tb, max_tile, _round_up(B, 128)))


# --------------------------------------------------------------------------- #
# Parameter preparation (hoisted out of the per-forward path)
# --------------------------------------------------------------------------- #
def pad_params(w1, b1, w2, b2, *, stream_dtype=jnp.float32):
    """Zero-pad the hidden dim 100 -> 128 once, outside the forward call.

    stream_dtype=jnp.bfloat16 halves the dominant HBM traffic (x / w1 streaming)
    at the cost of bf16 input rounding; MXU accumulation stays f32 either way.
    Default f32 preserves the PyTorch module's numerics.
    """
    F, H = w1.shape
    w1p = jnp.zeros((F, _HP), stream_dtype).at[:, :H].set(w1.astype(stream_dtype))
    b1p = jnp.zeros((1, _HP), jnp.float32).at[0, :H].set(b1.astype(jnp.float32))
    w2p = jnp.zeros((1, _HP), jnp.float32).at[0, :H].set(w2[:, 0].astype(jnp.float32))
    b2p = b2.reshape(1, 1).astype(jnp.float32)
    return w1p, b1p, w2p, b2p


# --------------------------------------------------------------------------- #
# Forward
# --------------------------------------------------------------------------- #
def domain_classifier_padded(x, padded_params):
    """x: (B, F); padded_params from pad_params(). Returns (B, 1) f32."""
    w1p, b1p, w2p, b2p = padded_params
    B, F = x.shape
    stream_dtype = w1p.dtype
    x = x.astype(stream_dtype)

    budget, max_tile, vmem_limit, split_for_2tc = _tiling_config()
    TB = _pick_batch_tile(B, F, w1p.dtype.itemsize,
                          budget_bytes=budget, max_tile=max_tile)
    Bp0 = _round_up(B, 128)
    if split_for_2tc and Bp0 >= 2 * 128:
        # Give the "parallel" grid >= 2 steps so both v7x TensorCores get work.
        TB = min(TB, _round_up((Bp0 + 1) // 2, 128))
    Bp = _round_up(B, TB)
    xp = x if Bp == B else jnp.pad(x, ((0, Bp - B), (0, 0)))

    Fp = _round_up(F, 128)
    cost = pl.CostEstimate(
        flops=2 * Bp * Fp * _HP + 4 * Bp * _HP,
        transcendentals=Bp,
        bytes_accessed=(Bp * F * xp.dtype.itemsize
                        + F * _HP * w1p.dtype.itemsize
                        + 4 * (2 * _HP + 1) + 4 * Bp),
    )

    # NOTE: with the larger generation-aware tiles the kernel is HBM-bound on
    # streaming x; pipeline_mode=pl.Buffered(3) on the x spec is a sweep
    # candidate for very small F, but DMA bandwidth (not issue latency) is the
    # binding resource here, so default double-buffering is kept.
    out = pl.pallas_call(
        domain_classifier_kernel,
        out_shape=jax.ShapeDtypeStruct((Bp, 1), jnp.float32),
        grid_spec=pltpu.PrefetchScalarGridSpec(
            num_scalar_prefetch=0,
            grid=(Bp // TB,),
            in_specs=[
                pl.BlockSpec((TB, F), lambda i: (i, 0)),     # streamed batch tiles
                pl.BlockSpec((F, _HP), lambda i: (0, 0)),    # resident fc1 weight
                pl.BlockSpec((1, _HP), lambda i: (0, 0)),    # fc1 bias
                pl.BlockSpec((1, _HP), lambda i: (0, 0)),    # fc2 weight (row)
                pl.BlockSpec(memory_space=pltpu.MemorySpace.SMEM),  # fc2 bias (scalar)
            ],
            out_specs=pl.BlockSpec((TB, 1), lambda i: (i, 0)),
        ),
        compiler_params=pltpu.CompilerParams(
            dimension_semantics=("parallel",),   # megacore sharding on v7x
            vmem_limit_bytes=vmem_limit,         # generation-aware limit
        ),
        cost_estimate=cost,
    )(xp, w1p, b1p, w2p, b2p)

    return out[:B]


def domain_classifier(x, w1, b1, w2, b2):
    """x: (B, F) f32; w1: (F, 100); b1: (100,); w2: (100, 1); b2: (1,).
    Returns sigmoid(relu(x @ w1 + b1) @ w2 + b2) with shape (B, 1)."""
    return domain_classifier_padded(x, pad_params(w1, b1, w2, b2))


# --------------------------------------------------------------------------- #
# Deterministic init mimicking PyTorch Linear default (uniform +/- 1/sqrt(fan_in))
# --------------------------------------------------------------------------- #
def init_params(key, in_features, hidden=100, out=1):
    k1, k2, k3, k4 = jax.random.split(key, 4)
    lim1 = 1.0 / (in_features ** 0.5)
    lim2 = 1.0 / (hidden ** 0.5)
    w1 = jax.random.uniform(k1, (in_features, hidden), jnp.float32, -lim1, lim1)
    b1 = jax.random.uniform(k2, (hidden,), jnp.float32, -lim1, lim1)
    w2 = jax.random.uniform(k3, (hidden, out), jnp.float32, -lim2, lim2)
    b2 = jax.random.uniform(k4, (out,), jnp.float32, -lim2, lim2)
    return w1, b1, w2, b2


if __name__ == "__main__":
    key = jax.random.PRNGKey(0)
    kx, kp = jax.random.split(key)

    B, in_features = 2, 32
    x = jax.random.normal(kx, (B, in_features), jnp.float32)
    w1, b1, w2, b2 = init_params(kp, in_features)

    padded = pad_params(w1, b1, w2, b2)          # hoisted: pad weights once
    out = domain_classifier_padded(x, padded)
    out = jax.block_until_ready(out)

    # Reference check in plain JAX (f32 end-to-end, identical math).
    ref = jax.nn.sigmoid(jnp.maximum(x @ w1 + b1, 0.0) @ w2 + b2)
    assert out.shape == (B, 1)
    assert jnp.allclose(out, ref, atol=1e-5, rtol=1e-5)

    print("KERNEL_OK")
</pallas_src>

<mosaic_0001>
module attributes {stable_mosaic.version = 11 : i64} {
  func.func @domain_classifier_kernel(%arg0: i32, %arg1: memref<128x32xf32, #tpu.memory_space<vmem>>, %arg2: memref<32x128xf32, #tpu.memory_space<vmem>>, %arg3: memref<1x128xf32, #tpu.memory_space<vmem>>, %arg4: memref<1x128xf32, #tpu.memory_space<vmem>>, %arg5: memref<1x1xf32, #tpu.memory_space<smem>>, %arg6: memref<128x1xf32, #tpu.memory_space<vmem>>) attributes {dimension_semantics = [#tpu.dimension_semantics<parallel>], iteration_bounds = array<i64: 1>, scalar_prefetch = 0 : i64, scratch_operands = 0 : i64, tpu.core_type = #tpu.core_type<tc>, window_params = [{transform_indices = @transform_0, window_bounds = array<i64: 128, 32>}, {pipeline_mode = #tpu.pipeline_mode<synchronous>, transform_indices = @transform_1, window_bounds = array<i64: 32, 128>}, {pipeline_mode = #tpu.pipeline_mode<synchronous>, transform_indices = @transform_2, window_bounds = array<i64: 1, 128>}, {pipeline_mode = #tpu.pipeline_mode<synchronous>, transform_indices = @transform_3, window_bounds = array<i64: 1, 128>}, {transform_indices = @transform_4, window_bounds = array<i64: 1, 1>}, {transform_indices = @transform_5, window_bounds = array<i64: 128, 1>}]} {
    %c0 = arith.constant 0 : index
    %c0_0 = arith.constant 0 : index
    %0 = vector.load %arg1[%c0, %c0_0] : memref<128x32xf32, #tpu.memory_space<vmem>>, vector<128x32xf32>
    %c0_1 = arith.constant 0 : index
    %c0_2 = arith.constant 0 : index
    %1 = vector.load %arg2[%c0_1, %c0_2] : memref<32x128xf32, #tpu.memory_space<vmem>>, vector<32x128xf32>
    %cst = arith.constant dense<0.000000e+00> : vector<128x128xf32>
    %2 = tpu.matmul %0, %1, %cst {dimension_numbers = #tpu.dot_dimension_numbers<[1], [0], [0], [1], [0, 0, 1, 1], [], []>} : vector<128x32xf32>, vector<32x128xf32>, vector<128x128xf32> -> vector<128x128xf32>
    %c0_3 = arith.constant 0 : index
    %c0_4 = arith.constant 0 : index
    %3 = vector.load %arg3[%c0_3, %c0_4] : memref<1x128xf32, #tpu.memory_space<vmem>>, vector<1x128xf32>
    %4 = vector.broadcast %3 : vector<1x128xf32> to vector<128x128xf32>
    %5 = arith.addf %2, %4 : vector<128x128xf32>
    %cst_5 = arith.constant 0.000000e+00 : f32
    %6 = vector.broadcast %cst_5 : f32 to vector<128x128xf32>
    %7 = arith.maximumf %5, %6 : vector<128x128xf32>
    %c0_6 = arith.constant 0 : index
    %c0_7 = arith.constant 0 : index
    %8 = vector.load %arg4[%c0_6, %c0_7] : memref<1x128xf32, #tpu.memory_space<vmem>>, vector<1x128xf32>
    %9 = vector.broadcast %8 : vector<1x128xf32> to vector<128x128xf32>
    %10 = arith.mulf %7, %9 : vector<128x128xf32>
    %cst_8 = arith.constant dense<0.000000e+00> : vector<128xf32>
    %11 = vector.multi_reduction <add>, %10, %cst_8 [1] : vector<128x128xf32> to vector<128xf32>
    %12 = vector.shape_cast %11 : vector<128xf32> to vector<128x1xf32>
    %c0_9 = arith.constant 0 : index
    %c0_10 = arith.constant 0 : index
    %13 = memref.load %arg5[%c0_9, %c0_10] : memref<1x1xf32, #tpu.memory_space<smem>>
    %14 = vector.broadcast %13 : f32 to vector<128x1xf32>
    %15 = arith.addf %12, %14 : vector<128x1xf32>
    %16 = arith.negf %15 : vector<128x1xf32>
    %17 = math.exp %16 : vector<128x1xf32>
    %cst_11 = arith.constant 1.000000e+00 : f32
    %18 = vector.broadcast %cst_11 : f32 to vector<128x1xf32>
    %19 = arith.addf %18, %17 : vector<128x1xf32>
    %20 = arith.divf %18, %19 : vector<128x1xf32>
    %c0_12 = arith.constant 0 : index
    %c0_13 = arith.constant 0 : index
    %21 = vector.load %arg6[%c0_12, %c0_13] : memref<128x1xf32, #tpu.memory_space<vmem>>, vector<128x1xf32>
    tpu.vector_store %arg6[%c0_12, %c0_13], %20 {strides = array<i32>} : memref<128x1xf32, #tpu.memory_space<vmem>>, vector<128x1xf32>,
    return
  }
  func.func @transform_0(%arg0: i32) -> (i32, i32) {
    %c0_i32 = arith.constant 0 : i32
    %c0_i32_0 = arith.constant 0 : i32
    return %arg0, %c0_i32 : i32, i32
  }
  func.func @transform_1(%arg0: i32) -> (i32, i32) {
    %c0_i32 = arith.constant 0 : i32
    %c0_i32_0 = arith.constant 0 : i32
    %c0_i32_1 = arith.constant 0 : i32
    return %c0_i32, %c0_i32_0 : i32, i32
  }
  func.func @transform_2(%arg0: i32) -> (i32, i32) {
    %c0_i32 = arith.constant 0 : i32
    %c0_i32_0 = arith.constant 0 : i32
    %c0_i32_1 = arith.constant 0 : i32
    return %c0_i32, %c0_i32_0 : i32, i32
  }
  func.func @transform_3(%arg0: i32) -> (i32, i32) {
    %c0_i32 = arith.constant 0 : i32
    %c0_i32_0 = arith.constant 0 : i32
    %c0_i32_1 = arith.constant 0 : i32
    return %c0_i32, %c0_i32_0 : i32, i32
  }
  func.func @transform_4(%arg0: i32) -> (i32, i32) {
    %c0_i32 = arith.constant 0 : i32
    %c0_i32_0 = arith.constant 0 : i32
    %c0_i32_1 = arith.constant 0 : i32
    return %c0_i32, %c0_i32_0 : i32, i32
  }
  func.func @transform_5(%arg0: i32) -> (i32, i32) {
    %c0_i32 = arith.constant 0 : i32
    %c0_i32_0 = arith.constant 0 : i32
    return %arg0, %c0_i32 : i32, i32
  }
}

</mosaic_0001>

<llo_original>
// kernel: tpu_custom_call.1
$region0: #{tpu_custom_call.1}
  #allocation0 [shape = 'u32[]', space=smem, size = 0x4, offset = 0x4, fixed_abs, tag = 'smem constant byte address 0x4 - core index']
  #allocation1 [shape = 'u32[144,128]{1,0:T(1,128)}', space=vmem, size = 0x12000, scoped, tag = 'internal scratch']
  #allocation2 [shape = 'f32[1,1]{1,0:T(1,128)S(6)}', space=smem, size = 0x200, scoped, tag = 'scoped memory for tpu_custom_call.1']
  %s0 = inlined_call_operand.vmem [shape: f32[128,32], index: 0, kind: input, shape index: {}]
  %s1 = inlined_call_operand.vmem [shape: f32[32,128], index: 1, kind: input, shape index: {}]
  %s2 = inlined_call_operand.vmem [shape: f32[1,128], index: 2, kind: input, shape index: {}]
  %s3 = inlined_call_operand.vmem [shape: f32[1,128], index: 3, kind: input, shape index: {}]
  %s4 = inlined_call_operand.<no memory space> [shape: f32[1,1], index: 4, kind: input, shape index: {}]
  %s5 = inlined_call_operand.vmem [shape: f32[128,1], index: 5, kind: output, shape index: {}]
  %s6 = sld [smem:[#allocation0]]
  $region30: #{tpu_custom_call.1} parent=0
    _
  %s8 = ssub.s32 1, %s6
  %s9 = scalar_select 0, %s8, %s6
  %10 = sst [smem:[#allocation2]] %s4
  // Predicated region
  $region2: #{tpu_custom_call.1} parent=0 // pred_check
    _
  $region3: #{tpu_custom_call.1} parent=0 // pred_check_branch
    %12 = sbr.rel (0) target = $region5
  $region4: #{tpu_custom_call.1} parent=0 // pred_region
    _
  $region5: #{tpu_custom_call.1} parent=0 // pred_fallthru
    _
  // Predicated region
  $region6: #{tpu_custom_call.1} parent=0 // pred_check
    _
  $region7: #{tpu_custom_call.1} parent=0 // pred_check_branch
    %14 = sbr.rel (0) target = $region9
  $region8: #{tpu_custom_call.1} parent=0 // pred_region
    _
  $region9: #{tpu_custom_call.1} parent=0 // pred_fallthru
    _
  // Predicated region
  $region10: #{tpu_custom_call.1} parent=0 // pred_check
    _
  $region11: #{tpu_custom_call.1} parent=0 // pred_check_branch
    %16 = sbr.rel (0) target = $region13
  $region12: #{tpu_custom_call.1} parent=0 // pred_region
    _
  $region13: #{tpu_custom_call.1} parent=0 // pred_fallthru
    _
  // Predicated region
  $region14: #{tpu_custom_call.1} parent=0 // pred_check
    _
  $region15: #{tpu_custom_call.1} parent=0 // pred_check_branch
    %18 = sbr.rel (0) target = $region17
  $region16: #{tpu_custom_call.1} parent=0 // pred_region
    _
  $region17: #{tpu_custom_call.1} parent=0 // pred_fallthru
    _
  // Predicated region
  $region18: #{tpu_custom_call.1} parent=0 // pred_check
    _
  $region19: #{tpu_custom_call.1} parent=0 // pred_check_branch
    %20 = sbr.rel (0) target = $region21
  $region20: #{tpu_custom_call.1} parent=0 // pred_region
    _
  $region21: #{tpu_custom_call.1} parent=0 // pred_fallthru
    _
  %v21 = vld [vmem:[%s0] sm:$0xff]
  %v22 = vld [vmem:[%s0 + $0x8] sm:$0xff]
  %v23 = vld [vmem:[%s0 + $0x10] sm:$0xff]
  %v24 = vld [vmem:[%s0 + $0x18] sm:$0xff]
  %v25 = vld [vmem:[%s0 + $0x20] sm:$0xff]
  %v26 = vld [vmem:[%s0 + $0x28] sm:$0xff]
  %v27 = vld [vmem:[%s0 + $0x30] sm:$0xff]
  %v28 = vld [vmem:[%s0 + $0x38] sm:$0xff]
  %v29 = vld [vmem:[%s0 + $0x40] sm:$0xff]
  %v30 = vld [vmem:[%s0 + $0x48] sm:$0xff]
  %v31 = vld [vmem:[%s0 + $0x50] sm:$0xff]
  %v32 = vld [vmem:[%s0 + $0x58] sm:$0xff]
  %v33 = vld [vmem:[%s0 + $0x60] sm:$0xff]
  %v34 = vld [vmem:[%s0 + $0x68] sm:$0xff]
  %v35 = vld [vmem:[%s0 + $0x70] sm:$0xff]
  %v36 = vld [vmem:[%s0 + $0x78] sm:$0xff]
  %v37 = vld [vmem:[%s1] sm:$0xff]
  %v38 = vld [vmem:[%s1 + $0x8] sm:$0xff]
  %v39 = vld [vmem:[%s1 + $0x10] sm:$0xff]
  %v40 = vld [vmem:[%s1 + $0x18] sm:$0xff]
  %v41 = vld [vmem:[%s2] sm:$0x1]
  %v43 = vlaneseq
  %v44 = vshrl.u32 %v43, 7
  %v45 = vsub.s32 0, %v44
  %v46 = vrot.slane %v41, %v45
  %vm48 = vcmask 261120
  %v50 = vsel %vm48, %v21, 0
  %v53 = vsel %vm48, %v22, 0
  %v56 = vsel %vm48, %v23, 0
  %v59 = vsel %vm48, %v24, 0
  %v62 = vsel %vm48, %v25, 0
  %v65 = vsel %vm48, %v26, 0
  %v68 = vsel %vm48, %v27, 0
  %v71 = vsel %vm48, %v28, 0
  %v74 = vsel %vm48, %v29, 0
  %v77 = vsel %vm48, %v30, 0
  %v80 = vsel %vm48, %v31, 0
  %v83 = vsel %vm48, %v32, 0
  %v86 = vsel %vm48, %v33, 0
  %v89 = vsel %vm48, %v34, 0
  %v92 = vsel %vm48, %v35, 0
  %v95 = vsel %vm48, %v36, 0
  %97 = vmatprep.subr.mxu0 0.0
  %98 = vmatpush1.msra.mxu0 %v37
  %99 = vmatprep.subr.mxu0 0.0
  %100 = vmatpush1.msra.mxu0 %v38
  %101 = vmatprep.subr.mxu0 0.0
  %102 = vmatpush1.msra.mxu0 %v39
  %103 = vmatprep.subr.mxu0 0.0
  %104 = vmatpush1.msra.mxu0 %v40
  %105 = vmatprep.subr.mxu0 0.0
  %106 = vmatpush1.msra.mxu0 0.0
  %107 = vmatprep.subr.mxu0 0.0
  %108 = vmatpush1.msra.mxu0 0.0
  %109 = vmatprep.subr.mxu0 0.0
  %110 = vmatpush1.msra.mxu0 0.0
  %111 = vmatprep.subr.mxu0 0.0
  %112 = vmatpush1.msra.mxu0 0.0
  %113 = vmatprep.subr.mxu0 0.0
  %114 = vmatpush1.msra.mxu0 0.0
  %115 = vmatprep.subr.mxu0 0.0
  %116 = vmatpush1.msra.mxu0 0.0
  %117 = vmatprep.subr.mxu0 0.0
  %118 = vmatpush1.msra.mxu0 0.0
  %119 = vmatprep.subr.mxu0 0.0
  %120 = vmatpush1.msra.mxu0 0.0
  %121 = vmatprep.subr.mxu0 0.0
  %122 = vmatpush1.msra.mxu0 0.0
  %123 = vmatprep.subr.mxu0 0.0
  %124 = vmatpush1.msra.mxu0 0.0
  %125 = vmatprep.subr.mxu0 0.0
  %126 = vmatpush1.msra.mxu0 0.0
  %127 = vmatprep.subr.mxu0 0.0
  %128 = vmatpush1.msra.mxu0 0.0
  %129 = vmatprep.subr.mxu0 0.0
  %130 = vmatpush1.msra.mxu0 0.0
  %131 = vmatprep.subr.mxu0 0.0
  %132 = vmatpush1.msra.mxu0 0.0
  %133 = vmatprep.subr.mxu0 0.0
  %134 = vmatpush1.msra.mxu0 0.0
  %135 = vmatprep.subr.mxu0 0.0
  %136 = vmatpush1.msra.mxu0 0.0
  %137 = vmatprep.subr.mxu0 0.0
  %138 = vmatpush1.msra.mxu0 0.0
  %139 = vmatprep.subr.mxu0 0.0
  %140 = vmatpush1.msra.mxu0 0.0
  %141 = vmatprep.subr.mxu0 0.0
  %142 = vmatpush1.msra.mxu0 0.0
  %143 = vmatprep.subr.mxu0 0.0
  %144 = vmatpush1.msra.mxu0 0.0
  %145 = vmatprep.subr.mxu0 0.0
  %146 = vmatpush1.msra.mxu0 0.0
  %147 = vmatprep.subr.mxu0 0.0
  %148 = vmatpush1.msra.mxu0 0.0
  %149 = vmatprep.subr.mxu0 0.0
  %150 = vmatpush1.msra.mxu0 0.0
  %151 = vmatprep.subr.mxu0 0.0
  %152 = vmatpush1.msra.mxu0 0.0
  %153 = vmatprep.subr.mxu0 0.0
  %154 = vmatpush1.msra.mxu0 0.0
  %155 = vmatprep.subr.mxu0 0.0
  %156 = vmatpush1.msra.mxu0 0.0
  %157 = vmatprep.subr.mxu0 0.0
  %158 = vmatpush1.msra.mxu0 0.0
  %159 = vmatprep.subr.mxu0 0.0
  %160 = vmatpush1.msra.mxu0 0.0
  %161 = vmatprep.mubr.f32.mxu0 0.0
  %162 = vmatmul.mubr.f32.gmra.mrb[0].mxu0 %v50
  %v163 = vpop.f32.mrb[0].mxu0
  %v164 = vadd.f32 %v46, %v163
  %v165 = vpop.f32.mrb[0].mxu0
  %166 = vmatprep.mubr.f32.mxu0 0.0
  %167 = vmatmul.mubr.f32.gmra.mrb[0].mxu0 %v53
  %v168 = vpop.f32.mrb[0].mxu0
  %v169 = vadd.f32 %v46, %v168
  %v170 = vpop.f32.mrb[0].mxu0
  %171 = vmatprep.mubr.f32.mxu0 0.0
  %172 = vmatmul.mubr.f32.gmra.mrb[0].mxu0 %v56
  %v173 = vpop.f32.mrb[0].mxu0
  %v174 = vadd.f32 %v46, %v173
  %v175 = vpop.f32.mrb[0].mxu0
  %176 = vmatprep.mubr.f32.mxu0 0.0
  %177 = vmatmul.mubr.f32.gmra.mrb[0].mxu0 %v59
  %v178 = vpop.f32.mrb[0].mxu0
  %v179 = vadd.f32 %v46, %v178
  %v180 = vpop.f32.mrb[0].mxu0
  %181 = vmatprep.mubr.f32.mxu0 0.0
  %182 = vmatmul.mubr.f32.gmra.mrb[0].mxu0 %v62
  %v183 = vpop.f32.mrb[0].mxu0
  %v184 = vadd.f32 %v46, %v183
  %v185 = vpop.f32.mrb[0].mxu0
  %186 = vmatprep.mubr.f32.mxu0 0.0
  %187 = vmatmul.mubr.f32.gmra.mrb[0].mxu0 %v65
  %v188 = vpop.f32.mrb[0].mxu0
  %v189 = vadd.f32 %v46, %v188
  %v190 = vpop.f32.mrb[0].mxu0
  %191 = vmatprep.mubr.f32.mxu0 0.0
  %192 = vmatmul.mubr.f32.gmra.mrb[0].mxu0 %v68
  %v193 = vpop.f32.mrb[0].mxu0
  %v194 = vadd.f32 %v46, %v193
  %v195 = vpop.f32.mrb[0].mxu0
  %196 = vmatprep.mubr.f32.mxu0 0.0
  %197 = vmatmul.mubr.f32.gmra.mrb[0].mxu0 %v71
  %v198 = vpop.f32.mrb[0].mxu0
  %v199 = vadd.f32 %v46, %v198
  %v200 = vpop.f32.mrb[0].mxu0
  %201 = vmatprep.mubr.f32.mxu0 0.0
  %202 = vmatmul.mubr.f32.gmra.mrb[0].mxu0 %v74
  %v203 = vpop.f32.mrb[0].mxu0
  %v204 = vadd.f32 %v46, %v203
  %v205 = vpop.f32.mrb[0].mxu0
  %206 = vmatprep.mubr.f32.mxu0 0.0
  %207 = vmatmul.mubr.f32.gmra.mrb[0].mxu0 %v77
  %v208 = vpop.f32.mrb[0].mxu0
  %v209 = vadd.f32 %v46, %v208
  %v210 = vpop.f32.mrb[0].mxu0
  %211 = vmatprep.mubr.f32.mxu0 0.0
  %212 = vmatmul.mubr.f32.gmra.mrb[0].mxu0 %v80
  %v213 = vpop.f32.mrb[0].mxu0
  %v214 = vadd.f32 %v46, %v213
  %v215 = vpop.f32.mrb[0].mxu0
  %216 = vmatprep.mubr.f32.mxu0 0.0
  %217 = vmatmul.mubr.f32.gmra.mrb[0].mxu0 %v83
  %v218 = vpop.f32.mrb[0].mxu0
  %v219 = vadd.f32 %v46, %v218
  %v220 = vpop.f32.mrb[0].mxu0
  %221 = vmatprep.mubr.f32.mxu0 0.0
  %222 = vmatmul.mubr.f32.gmra.mrb[0].mxu0 %v86
  %v223 = vpop.f32.mrb[0].mxu0
  %v224 = vadd.f32 %v46, %v223
  %v225 = vpop.f32.mrb[0].mxu0
  %226 = vmatprep.mubr.f32.mxu0 0.0
  %227 = vmatmul.mubr.f32.gmra.mrb[0].mxu0 %v89
  %v228 = vpop.f32.mrb[0].mxu0
  %v229 = vadd.f32 %v46, %v228
  %v230 = vpop.f32.mrb[0].mxu0
  %231 = vmatprep.mubr.f32.mxu0 0.0
  %232 = vmatmul.mubr.f32.gmra.mrb[0].mxu0 %v92
  %v233 = vpop.f32.mrb[0].mxu0
  %v234 = vadd.f32 %v46, %v233
  %v235 = vpop.f32.mrb[0].mxu0
  %236 = vmatprep.mubr.f32.mxu0 0.0
  %237 = vmatmul.mubr.f32.gmra.mrb[0].mxu0 %v95
  %v238 = vpop.f32.mrb[0].mxu0
  %v239 = vadd.f32 %v46, %v238
  %v240 = vpop.f32.mrb[0].mxu0
  %241 = vdwg.mxu0
  %v242 = vmax.f32 %v164, 0.0
  %v243 = vmax.f32 %v169, 0.0
  %v244 = vmax.f32 %v174, 0.0
  %v245 = vmax.f32 %v179, 0.0
  %v246 = vmax.f32 %v184, 0.0
  %v247 = vmax.f32 %v189, 0.0
  %v248 = vmax.f32 %v194, 0.0
  %v249 = vmax.f32 %v199, 0.0
  %v250 = vmax.f32 %v204, 0.0
  %v251 = vmax.f32 %v209, 0.0
  %v252 = vmax.f32 %v214, 0.0
  %v253 = vmax.f32 %v219, 0.0
  %v254 = vmax.f32 %v224, 0.0
  %v255 = vmax.f32 %v229, 0.0
  %v256 = vmax.f32 %v234, 0.0
  %v257 = vmax.f32 %v239, 0.0
  %v258 = vld [vmem:[%s3] sm:$0x1]
  %v260 = vlaneseq
  %v261 = vshrl.u32 %v260, 7
  %v262 = vsub.s32 0, %v261
  %v263 = vrot.slane %v258, %v262
  %v265 = vmul.f32 %v242, %v263
  %v266 = vmul.f32 %v243, %v263
  %v267 = vmul.f32 %v244, %v263
  %v268 = vmul.f32 %v245, %v263
  %v269 = vmul.f32 %v246, %v263
  %v270 = vmul.f32 %v247, %v263
  %v271 = vmul.f32 %v248, %v263
  %v272 = vmul.f32 %v249, %v263
  %v273 = vmul.f32 %v250, %v263
  %v274 = vmul.f32 %v251, %v263
  %v275 = vmul.f32 %v252, %v263
  %v276 = vmul.f32 %v253, %v263
  %v277 = vmul.f32 %v254, %v263
  %v278 = vmul.f32 %v255, %v263
  %v279 = vmul.f32 %v256, %v263
  %v280 = vmul.f32 %v257, %v263
  %281 = vadd.xlane.f32.xlu0 %v265
  %v282 = vpop.xlane.xlu0 %281
  %283 = vadd.xlane.f32.xlu0 %v266
  %v284 = vpop.xlane.xlu0 %283
  %285 = vadd.xlane.f32.xlu0 %v267
  %v286 = vpop.xlane.xlu0 %285
  %287 = vadd.xlane.f32.xlu0 %v268
  %v288 = vpop.xlane.xlu0 %287
  %289 = vadd.xlane.f32.xlu0 %v269
  %v290 = vpop.xlane.xlu0 %289
  %291 = vadd.xlane.f32.xlu0 %v270
  %v292 = vpop.xlane.xlu0 %291
  %293 = vadd.xlane.f32.xlu0 %v271
  %v294 = vpop.xlane.xlu0 %293
  %295 = vadd.xlane.f32.xlu0 %v272
  %v296 = vpop.xlane.xlu0 %295
  %297 = vadd.xlane.f32.xlu0 %v273
  %v298 = vpop.xlane.xlu0 %297
  %299 = vadd.xlane.f32.xlu0 %v274
  %v300 = vpop.xlane.xlu0 %299
  %301 = vadd.xlane.f32.xlu0 %v275
  %v302 = vpop.xlane.xlu0 %301
  %303 = vadd.xlane.f32.xlu0 %v276
  %v304 = vpop.xlane.xlu0 %303
  %305 = vadd.xlane.f32.xlu0 %v277
  %v306 = vpop.xlane.xlu0 %305
  %307 = vadd.xlane.f32.xlu0 %v278
  %v308 = vpop.xlane.xlu0 %307
  %309 = vadd.xlane.f32.xlu0 %v279
  %v310 = vpop.xlane.xlu0 %309
  %311 = vadd.xlane.f32.xlu0 %v280
  %v312 = vpop.xlane.xlu0 %311
  %s313 = sld [smem:[#allocation2]]
  %v314 = vstv %s313
  %v315 = vadd.f32 %v282, %v314
  %v316 = vadd.f32 %v284, %v314
  %v317 = vadd.f32 %v286, %v314
  %v318 = vadd.f32 %v288, %v314
  %v319 = vadd.f32 %v290, %v314
  %v320 = vadd.f32 %v292, %v314
  %v321 = vadd.f32 %v294, %v314
  %v322 = vadd.f32 %v296, %v314
  %v323 = vadd.f32 %v298, %v314
  %v324 = vadd.f32 %v300, %v314
  %v325 = vadd.f32 %v302, %v314
  %v326 = vadd.f32 %v304, %v314
  %v327 = vadd.f32 %v306, %v314
  %v328 = vadd.f32 %v308, %v314
  %v329 = vadd.f32 %v310, %v314
  %v330 = vadd.f32 %v312, %v314
  %v331 = vxor.u32 %v315, 2147483648
  %v332 = vxor.u32 %v316, 2147483648
  %v333 = vxor.u32 %v317, 2147483648
  %v334 = vxor.u32 %v318, 2147483648
  %v335 = vxor.u32 %v319, 2147483648
  %v336 = vxor.u32 %v320, 2147483648
  %v337 = vxor.u32 %v321, 2147483648
  %v338 = vxor.u32 %v322, 2147483648
  %v339 = vxor.u32 %v323, 2147483648
  %v340 = vxor.u32 %v324, 2147483648
  %v341 = vxor.u32 %v325, 2147483648
  %v342 = vxor.u32 %v326, 2147483648
  %v343 = vxor.u32 %v327, 2147483648
  %v344 = vxor.u32 %v328, 2147483648
  %v345 = vxor.u32 %v329, 2147483648
  %v346 = vxor.u32 %v330, 2147483648
  %v347 = vmul.f32 %v331, 1.442695
  %v348 = vpow.pop %v347
  %v349 = vmul.f32 %v332, 1.442695
  %v350 = vpow.pop %v349
  %v351 = vmul.f32 %v333, 1.442695
  %v352 = vpow.pop %v351
  %v353 = vmul.f32 %v334, 1.442695
  %v354 = vpow.pop %v353
  %v355 = vmul.f32 %v335, 1.442695
  %v356 = vpow.pop %v355
  %v357 = vmul.f32 %v336, 1.442695
  %v358 = vpow.pop %v357
  %v359 = vmul.f32 %v337, 1.442695
  %v360 = vpow.pop %v359
  %v361 = vmul.f32 %v338, 1.442695
  %v362 = vpow.pop %v361
  %v363 = vmul.f32 %v339, 1.442695
  %v364 = vpow.pop %v363
  %v365 = vmul.f32 %v340, 1.442695
  %v366 = vpow.pop %v365
  %v367 = vmul.f32 %v341, 1.442695
  %v368 = vpow.pop %v367
  %v369 = vmul.f32 %v342, 1.442695
  %v370 = vpow.pop %v369
  %v371 = vmul.f32 %v343, 1.442695
  %v372 = vpow.pop %v371
  %v373 = vmul.f32 %v344, 1.442695
  %v374 = vpow.pop %v373
  %v375 = vmul.f32 %v345, 1.442695
  %v376 = vpow.pop %v375
  %v377 = vmul.f32 %v346, 1.442695
  %v378 = vpow.pop %v377
  %v379 = vadd.f32 %v348, 1.0
  %v380 = vadd.f32 %v350, 1.0
  %v381 = vadd.f32 %v352, 1.0
  %v382 = vadd.f32 %v354, 1.0
  %v383 = vadd.f32 %v356, 1.0
  %v384 = vadd.f32 %v358, 1.0
  %v385 = vadd.f32 %v360, 1.0
  %v386 = vadd.f32 %v362, 1.0
  %v387 = vadd.f32 %v364, 1.0
  %v388 = vadd.f32 %v366, 1.0
  %v389 = vadd.f32 %v368, 1.0
  %v390 = vadd.f32 %v370, 1.0
  %v391 = vadd.f32 %v372, 1.0
  %v392 = vadd.f32 %v374, 1.0
  %v393 = vadd.f32 %v376, 1.0
  %v394 = vadd.f32 %v378, 1.0
  %v395 = vrcp.pop %v379
  %v396 = vmul.f32 1.0, %v395
  %v397 = vrcp.pop %v380
  %v398 = vmul.f32 1.0, %v397
  %v399 = vrcp.pop %v381
  %v400 = vmul.f32 1.0, %v399
  %v401 = vrcp.pop %v382
  %v402 = vmul.f32 1.0, %v401
  %v403 = vrcp.pop %v383
  %v404 = vmul.f32 1.0, %v403
  %v405 = vrcp.pop %v384
  %v406 = vmul.f32 1.0, %v405
  %v407 = vrcp.pop %v385
  %v408 = vmul.f32 1.0, %v407
  %v409 = vrcp.pop %v386
  %v410 = vmul.f32 1.0, %v409
  %v411 = vrcp.pop %v387
  %v412 = vmul.f32 1.0, %v411
  %v413 = vrcp.pop %v388
  %v414 = vmul.f32 1.0, %v413
  %v415 = vrcp.pop %v389
  %v416 = vmul.f32 1.0, %v415
  %v417 = vrcp.pop %v390
  %v418 = vmul.f32 1.0, %v417
  %v419 = vrcp.pop %v391
  %v420 = vmul.f32 1.0, %v419
  %v421 = vrcp.pop %v392
  %v422 = vmul.f32 1.0, %v421
  %v423 = vrcp.pop %v393
  %v424 = vmul.f32 1.0, %v423
  %v425 = vrcp.pop %v394
  %v426 = vmul.f32 1.0, %v425
  %vm427 = vcmask 7168
  %428 = vst.msk [vmem:[%s5] sm:$0xff] %vm427, %v396
  %429 = vst.msk [vmem:[%s5 + $0x8] sm:$0xff] %vm427, %v398
  %430 = vst.msk [vmem:[%s5 + $0x10] sm:$0xff] %vm427, %v400
  %431 = vst.msk [vmem:[%s5 + $0x18] sm:$0xff] %vm427, %v402
  %432 = vst.msk [vmem:[%s5 + $0x20] sm:$0xff] %vm427, %v404
  %433 = vst.msk [vmem:[%s5 + $0x28] sm:$0xff] %vm427, %v406
  %434 = vst.msk [vmem:[%s5 + $0x30] sm:$0xff] %vm427, %v408
  %435 = vst.msk [vmem:[%s5 + $0x38] sm:$0xff] %vm427, %v410
  %436 = vst.msk [vmem:[%s5 + $0x40] sm:$0xff] %vm427, %v412
  %437 = vst.msk [vmem:[%s5 + $0x48] sm:$0xff] %vm427, %v414
  %438 = vst.msk [vmem:[%s5 + $0x50] sm:$0xff] %vm427, %v416
  %439 = vst.msk [vmem:[%s5 + $0x58] sm:$0xff] %vm427, %v418
  %440 = vst.msk [vmem:[%s5 + $0x60] sm:$0xff] %vm427, %v420
  %441 = vst.msk [vmem:[%s5 + $0x68] sm:$0xff] %vm427, %v422
  %442 = vst.msk [vmem:[%s5 + $0x70] sm:$0xff] %vm427, %v424
  %443 = vst.msk [vmem:[%s5 + $0x78] sm:$0xff] %vm427, %v426
  // Predicated region
  $region22: #{tpu_custom_call.1} parent=0 // pred_check
    _
  $region23: #{tpu_custom_call.1} parent=0 // pred_check_branch
    %445 = sbr.rel (0) target = $region25
  $region24: #{tpu_custom_call.1} parent=0 // pred_region
    _
  $region25: #{tpu_custom_call.1} parent=0 // pred_fallthru
    _
  // Predicated region
  $region26: #{tpu_custom_call.1} parent=0 // pred_check
    _
  $region27: #{tpu_custom_call.1} parent=0 // pred_check_branch
    %447 = sbr.rel (0) target = $region29
  $region28: #{tpu_custom_call.1} parent=0 // pred_region
    _
  $region29: #{tpu_custom_call.1} parent=0 // pred_fallthru
    _

</llo_original>
